<compile_context>
chip_gen: v5e
topology: v5e:2x2
jax: 0.10.0
libtpu: 0.0.40
codegen_flags: <defaults>
</compile_context>

<pallas_src>
import functools

import jax
import jax.numpy as jnp
from jax.experimental import pallas as pl
from jax.experimental.pallas import tpu as pltpu


def _ce_kernel(logits_ref, targets_ref, sum_ref, *,
               ignore_index, hw, tiles_per_split, need_tail):
    s = pl.program_id(1)           # parallel spatial split (megacore)
    j = pl.program_id(2)           # spatial-tile reduction axis (arbitrary, last)
    tile_hw = logits_ref.shape[-1]
    gj = s * tiles_per_split + j   # global spatial-tile index

    @pl.when(j == 0)
    def _():
        sum_ref[...] = jnp.zeros_like(sum_ref)

    logits = logits_ref[...].astype(jnp.float32)       # (1, C, T)
    tgt = targets_ref[...].astype(jnp.int32)           # (1, 1, T)

    # numerically-stable log-sum-exp over the class (sublane) axis
    m = jnp.max(logits, axis=1, keepdims=True)
    lse = m + jnp.log(jnp.sum(jnp.exp(logits - m), axis=1, keepdims=True))

    # gather logit at the target class via one-hot select (no dynamic gather on vregs)
    cls = jax.lax.broadcasted_iota(jnp.int32, logits.shape, 1)
    picked = jnp.sum(jnp.where(cls == tgt, logits, 0.0), axis=1, keepdims=True)

    valid = tgt != ignore_index
    nll = jnp.where(valid, lse - picked, 0.0)           # (1, 1, T)

    if need_tail:
        # Only tiles that overhang the true spatial extent pay for the position mask.
        is_tail = (gj + 1) * tile_hw > hw

        @pl.when(jnp.logical_not(is_tail))
        def _():
            sum_ref[...] += nll

        @pl.when(is_tail)
        def _():
            pos = gj * tile_hw + jax.lax.broadcasted_iota(jnp.int32, nll.shape, 2)
            sum_ref[...] += jnp.where(pos < hw, nll, 0.0)
    else:
        sum_ref[...] += nll


def _tpu_vmem_capacity_bytes():
    try:
        return int(pltpu.get_tpu_info().vmem_capacity_bytes)
    except Exception:
        return 64 * 1024 * 1024   # conservative fallback (v7x per-TC VMEM)


def cross_entropy(inputs, targets, mask=None, ignore_index=255, max_tile_hw=None):
    """inputs: (N, C, H, W) float logits (f32 or bf16); targets: (N, H, W) int labels."""
    N, C, H, W = inputs.shape
    hw = H * W
    dtype_bytes = jnp.dtype(inputs.dtype).itemsize

    # ---- generation-aware tile sizing & VMEM budget -------------------------------------
    vmem_cap = _tpu_vmem_capacity_bytes()
    if vmem_cap >= 96 * 1024 * 1024:        # v5e / v6e: 128 MiB physical VMEM
        block_bytes = 4 * 1024 * 1024
        vmem_limit = 64 * 1024 * 1024
    else:                                    # v7x: 64 MiB per TensorCore
        block_bytes = 2 * 1024 * 1024
        vmem_limit = 40 * 1024 * 1024

    hw_pad = pl.cdiv(hw, 128) * 128
    tile_hw = block_bytes // max(1, C * dtype_bytes)
    tile_hw = min(tile_hw, hw_pad)
    tile_hw = max(128, (tile_hw // 128) * 128)          # lane-dense, multiple of 128
    if max_tile_hw is not None:                          # test hook / manual override
        tile_hw = min(tile_hw, max(128, (max_tile_hw // 128) * 128))
    # TODO(synk): very large C (thousands of classes) would need a streaming class-tile axis
    # with online LSE in VMEM scratch; here we only clamp tile_hw down to 128.

    grid_j = pl.cdiv(hw, tile_hw)

    # 2-way spatial split as an extra "parallel" axis so v7x megacore engages even at N=1-2
    # (single-TC v5e/v6e just iterate it). Overflow tiles are clamped + masked.
    split = 2 if grid_j >= 2 else 1
    tps = pl.cdiv(grid_j, split)                         # tiles per split
    need_tail = (split * tps * tile_hw) != hw
    last_blk = grid_j - 1

    # free reshape: NCHW row-major -> (N, C, H*W): classes on sublanes, spatial on lanes
    logits = inputs.reshape(N, C, hw)

    # targets: fuse mask -> ignore_index, compute the mean denominator here (no count
    # accumulator in the kernel), and ship a narrow int16 stream when it fits.
    tgt = targets.reshape(N, hw).astype(jnp.int32)
    if mask is not None:
        tgt = jnp.where(mask.reshape(N, hw), jnp.int32(ignore_index), tgt)
    denom = jnp.sum((tgt != ignore_index).astype(jnp.float32))
    use_i16 = (C <= 32767) and (-32768 <= ignore_index <= 32767)
    tgt = tgt.astype(jnp.int16 if use_i16 else jnp.int32).reshape(N, 1, hw)

    kernel = functools.partial(
        _ce_kernel, ignore_index=ignore_index, hw=hw,
        tiles_per_split=tps, need_tail=need_tail)

    sums = pl.pallas_call(
        kernel,
        out_shape=jax.ShapeDtypeStruct((N * split, 1, tile_hw), jnp.float32),
        grid_spec=pltpu.PrefetchScalarGridSpec(
            num_scalar_prefetch=0,
            grid=(N, split, tps),
            in_specs=[
                pl.BlockSpec((1, C, tile_hw),
                             lambda n, s, j: (n, 0, jnp.minimum(s * tps + j, last_blk))),
                pl.BlockSpec((1, 1, tile_hw),
                             lambda n, s, j: (n, 0, jnp.minimum(s * tps + j, last_blk))),
            ],
            out_specs=pl.BlockSpec((1, 1, tile_hw),
                                   lambda n, s, j: (n * split + s, 0, 0)),
        ),
        compiler_params=pltpu.CompilerParams(
            # batch & spatial-split parallel (megacore); spatial-tile reduction axis arbitrary
            dimension_semantics=("parallel", "parallel", "arbitrary"),
            vmem_limit_bytes=vmem_limit),
    )(logits, tgt)

    # tiny cross-lane / cross-batch reduce + divide outside the kernel
    return jnp.sum(sums) / denom


def _reference(inputs, targets, mask=None, ignore_index=255):
    N, C, H, W = inputs.shape
    logits = jnp.transpose(inputs, (0, 2, 3, 1)).reshape(-1, C).astype(jnp.float32)
    tgt = targets.astype(jnp.int32).reshape(-1)
    if mask is not None:
        tgt = jnp.where(mask.reshape(-1), jnp.int32(ignore_index), tgt)
    logp = jax.nn.log_softmax(logits, axis=-1)
    valid = tgt != ignore_index
    picked = jnp.take_along_axis(logp, jnp.clip(tgt, 0, C - 1)[:, None], axis=-1)[:, 0]
    nll = jnp.where(valid, -picked, 0.0)
    return jnp.sum(nll) / jnp.sum(valid.astype(jnp.float32))


if __name__ == "__main__":
    key = jax.random.PRNGKey(0)
    k1, k2, k3 = jax.random.split(key, 3)

    # 1) primary shape from the module spec: (2, 4, 16, 16), some ignore_index pixels
    N, C, H, W = 2, 4, 16, 16
    inputs = jax.random.normal(k1, (N, C, H, W), dtype=jnp.float32)
    targets = jax.random.randint(k2, (N, H, W), 0, C, dtype=jnp.int32)
    ign = jax.random.bernoulli(k3, 0.1, (N, H, W))
    targets = jnp.where(ign, jnp.int32(255), targets)
    loss = jax.block_until_ready(cross_entropy(inputs, targets))
    ref = _reference(inputs, targets)
    assert jnp.allclose(loss, ref, rtol=1e-5, atol=1e-5), (loss, ref)

    # 2) explicit mask path + spatial extent not a multiple of 128 (in-kernel tail masking)
    N2, C2, H2, W2 = 2, 4, 10, 10
    inputs2 = jax.random.normal(k1, (N2, C2, H2, W2), dtype=jnp.float32)
    targets2 = jax.random.randint(k2, (N2, H2, W2), 0, C2, dtype=jnp.int32)
    mask2 = jax.random.bernoulli(k3, 0.2, (N2, H2, W2))
    loss2 = jax.block_until_ready(cross_entropy(inputs2, targets2, mask=mask2))
    ref2 = _reference(inputs2, targets2, mask=mask2)
    assert jnp.allclose(loss2, ref2, rtol=1e-5, atol=1e-5), (loss2, ref2)

    # 3) multi-tile + 2-way parallel split + odd tile count: exercises the accumulator over
    #    the "arbitrary" axis, the split index clamp and the overflow-tile masking.
    N3, C3, H3, W3 = 2, 4, 32, 20          # hw = 640 -> 5 tiles of 128 -> split pads to 2x3
    inputs3 = jax.random.normal(k1, (N3, C3, H3, W3), dtype=jnp.float32)
    targets3 = jax.random.randint(k2, (N3, H3, W3), 0, C3, dtype=jnp.int32)
    loss3 = jax.block_until_ready(cross_entropy(inputs3, targets3, max_tile_hw=128))
    ref3 = _reference(inputs3, targets3)
    assert jnp.allclose(loss3, ref3, rtol=1e-5, atol=1e-5), (loss3, ref3)

    print("KERNEL_OK")
</pallas_src>

<mosaic_0001>
module attributes {stable_mosaic.version = 11 : i64} {
  func.func @_ce_kernel(%arg0: i32, %arg1: i32, %arg2: i32, %arg3: memref<1x4x256xf32, #tpu.memory_space<vmem>>, %arg4: memref<1x1x256xi16, #tpu.memory_space<vmem>>, %arg5: memref<1x1x256xf32, #tpu.memory_space<vmem>>) attributes {dimension_semantics = [#tpu.dimension_semantics<parallel>, #tpu.dimension_semantics<parallel>, #tpu.dimension_semantics<arbitrary>], iteration_bounds = array<i64: 2, 1, 1>, scalar_prefetch = 0 : i64, scratch_operands = 0 : i64, tpu.core_type = #tpu.core_type<tc>, window_params = [{transform_indices = @transform_0, window_bounds = array<i64: 1, 4, 256>}, {transform_indices = @transform_1, window_bounds = array<i64: 1, 1, 256>}, {transform_indices = @transform_2, window_bounds = array<i64: 1, 1, 256>}]} {
    %c0_i32 = arith.constant 0 : i32
    %0 = arith.cmpi eq, %arg2, %c0_i32 : i32
    %1 = arith.extui %0 : i1 to i32
    %c0_i32_0 = arith.constant 0 : i32
    %2 = arith.cmpi ne, %1, %c0_i32_0 : i32
    scf.if %2 {
      %cst_16 = arith.constant 0.000000e+00 : f32
      %30 = vector.broadcast %cst_16 : f32 to vector<1x1x256xf32>
      %c0_17 = arith.constant 0 : index
      %c0_18 = arith.constant 0 : index
      %c0_19 = arith.constant 0 : index
      %31 = vector.load %arg5[%c0_17, %c0_18, %c0_19] : memref<1x1x256xf32, #tpu.memory_space<vmem>>, vector<1x1x256xf32>
      tpu.vector_store %arg5[%c0_17, %c0_18, %c0_19], %30 {strides = array<i32>} : memref<1x1x256xf32, #tpu.memory_space<vmem>>, vector<1x1x256xf32>,
    } else {
    }
    %c0 = arith.constant 0 : index
    %c0_1 = arith.constant 0 : index
    %c0_2 = arith.constant 0 : index
    %3 = vector.load %arg3[%c0, %c0_1, %c0_2] : memref<1x4x256xf32, #tpu.memory_space<vmem>>, vector<1x4x256xf32>
    %c0_3 = arith.constant 0 : index
    %c0_4 = arith.constant 0 : index
    %c0_5 = arith.constant 0 : index
    %4 = vector.load %arg4[%c0_3, %c0_4, %c0_5] : memref<1x1x256xi16, #tpu.memory_space<vmem>>, vector<1x1x256xi16>
    %5 = arith.extsi %4 : vector<1x1x256xi16> to vector<1x1x256xi32>
    %cst = arith.constant dense<0xFF800000> : vector<1x256xf32>
    %6 = vector.multi_reduction <maximumf>, %3, %cst [1] : vector<1x4x256xf32> to vector<1x256xf32>
    %7 = vector.shape_cast %6 : vector<1x256xf32> to vector<1x1x256xf32>
    %8 = vector.broadcast %7 : vector<1x1x256xf32> to vector<1x4x256xf32>
    %9 = arith.subf %3, %8 : vector<1x4x256xf32>
    %10 = math.exp %9 : vector<1x4x256xf32>
    %cst_6 = arith.constant dense<0.000000e+00> : vector<1x256xf32>
    %11 = vector.multi_reduction <add>, %10, %cst_6 [1] : vector<1x4x256xf32> to vector<1x256xf32>
    %12 = vector.shape_cast %11 : vector<1x256xf32> to vector<1x1x256xf32>
    %13 = math.log %12 : vector<1x1x256xf32>
    %14 = arith.addf %7, %13 : vector<1x1x256xf32>
    %15 = tpu.iota {dimensions = array<i32: 1>} : vector<1x4x256xi32>
    %16 = vector.broadcast %5 : vector<1x1x256xi32> to vector<1x4x256xi32>
    %17 = arith.cmpi eq, %15, %16 : vector<1x4x256xi32>
    %cst_7 = arith.constant 0.000000e+00 : f32
    %18 = vector.broadcast %cst_7 : f32 to vector<1x4x256xf32>
    %19 = arith.select %17, %3, %18 : vector<1x4x256xi1>, vector<1x4x256xf32>
    %cst_8 = arith.constant dense<0.000000e+00> : vector<1x256xf32>
    %20 = vector.multi_reduction <add>, %19, %cst_8 [1] : vector<1x4x256xf32> to vector<1x256xf32>
    %21 = vector.shape_cast %20 : vector<1x256xf32> to vector<1x1x256xf32>
    %c255_i32 = arith.constant 255 : i32
    %22 = vector.broadcast %c255_i32 : i32 to vector<1x1x256xi32>
    %23 = arith.cmpi ne, %5, %22 : vector<1x1x256xi32>
    %24 = arith.subf %14, %21 : vector<1x1x256xf32>
    %cst_9 = arith.constant 0.000000e+00 : f32
    %25 = vector.broadcast %cst_9 : f32 to vector<1x1x256xf32>
    %26 = arith.select %23, %24, %25 : vector<1x1x256xi1>, vector<1x1x256xf32>
    %c0_10 = arith.constant 0 : index
    %c0_11 = arith.constant 0 : index
    %c0_12 = arith.constant 0 : index
    %27 = vector.load %arg5[%c0_10, %c0_11, %c0_12] : memref<1x1x256xf32, #tpu.memory_space<vmem>>, vector<1x1x256xf32>
    %28 = arith.addf %27, %26 : vector<1x1x256xf32>
    %c0_13 = arith.constant 0 : index
    %c0_14 = arith.constant 0 : index
    %c0_15 = arith.constant 0 : index
    %29 = vector.load %arg5[%c0_13, %c0_14, %c0_15] : memref<1x1x256xf32, #tpu.memory_space<vmem>>, vector<1x1x256xf32>
    tpu.vector_store %arg5[%c0_13, %c0_14, %c0_15], %28 {strides = array<i32>} : memref<1x1x256xf32, #tpu.memory_space<vmem>>, vector<1x1x256xf32>,
    return
  }
  func.func @transform_0(%arg0: i32, %arg1: i32, %arg2: i32) -> (i32, i32, i32) {
    %c1_i32 = arith.constant 1 : i32
    %0 = arith.muli %arg1, %c1_i32 : i32
    %1 = arith.addi %0, %arg2 : i32
    %c0_i32 = arith.constant 0 : i32
    %2 = arith.minsi %1, %c0_i32 : i32
    %c0_i32_0 = arith.constant 0 : i32
    %c0_i32_1 = arith.constant 0 : i32
    return %arg0, %c0_i32_0, %2 : i32, i32, i32
  }
  func.func @transform_1(%arg0: i32, %arg1: i32, %arg2: i32) -> (i32, i32, i32) {
    %c1_i32 = arith.constant 1 : i32
    %0 = arith.muli %arg1, %c1_i32 : i32
    %1 = arith.addi %0, %arg2 : i32
    %c0_i32 = arith.constant 0 : i32
    %2 = arith.minsi %1, %c0_i32 : i32
    %c0_i32_0 = arith.constant 0 : i32
    %c0_i32_1 = arith.constant 0 : i32
    return %arg0, %c0_i32_0, %2 : i32, i32, i32
  }
  func.func @transform_2(%arg0: i32, %arg1: i32, %arg2: i32) -> (i32, i32, i32) {
    %c1_i32 = arith.constant 1 : i32
    %0 = arith.muli %arg0, %c1_i32 : i32
    %1 = arith.addi %0, %arg1 : i32
    %c0_i32 = arith.constant 0 : i32
    %c0_i32_0 = arith.constant 0 : i32
    %c0_i32_1 = arith.constant 0 : i32
    return %1, %c0_i32, %c0_i32_0 : i32, i32, i32
  }
}

</mosaic_0001>

<llo_original>
// kernel: tpu_custom_call.1
$region0: #{tpu_custom_call.1}
  #allocation0 [shape = 'u32[]', space=smem, size = 0x4, offset = 0x4, fixed_abs, tag = 'smem constant byte address 0x4 - core index']
  #allocation1 [shape = 'u32[72,128]{1,0:T(1,128)}', space=vmem, size = 0x9000, scoped, tag = 'internal scratch']
  %s0 = inlined_call_operand.hbm [shape: f32[2,4,256], index: 0, kind: input, shape index: {}]
  %s1 = inlined_call_operand.vmem [shape: s16[2,1,256], index: 1, kind: input, shape index: {}]
  %s2 = inlined_call_operand.hbm [shape: f32[2,1,256], index: 2, kind: output, shape index: {}]
  %s3 = sld [smem:[#allocation0]]
  $region49: #{tpu_custom_call.1} parent=0
    _
  %s5 = ssub.s32 1, %s3
  %s6 = scalar_select 0, %s5, %s3
  $region1: #{tpu_custom_call.1} parent=0
    #allocation2 [shape = 'u8[8192]{0}', space=vmem, size = 0x2000, scoped, tag = 'input window, operand 0']
    #allocation3 [shape = 's32[2]{0}', space=sflag, size = 0x8, scoped, tag = 'scoped memory for tpu_custom_call.1']
    #allocation4 [shape = 's32[2]{0}', space=sflag, size = 0x8, scoped, tag = 'scoped memory for tpu_custom_call.1']
    #allocation5 [shape = 'u8[2048]{0}', space=vmem, size = 0x800, scoped, tag = 'output window, operand 0']
    %7 = vsyncpa [#allocation3], 0
    %s8 = scalar_lea.sflag [#allocation3], 1
    %9 = vsyncpa %s8, 0
    %10 = vsyncpa [#allocation4], 0
    %s11 = scalar_lea.sflag [#allocation4], 1
    %12 = vsyncpa %s11, 0
    loop: start=0, step=1, limit=4
    $region2: #{tpu_custom_call.1} parent=1 // loop_pre_header
      _
    $region3: #{tpu_custom_call.1} parent=1 // loop_header
      %s14 = sphi 0, %s18
      %p15 = scmp.ge.s32.totalorder %s14, 4
      %s21 = sphi 0, %s40
      %s22 = sphi 0, %s36
      %s23 = sphi 0, %s32
      %s24 = sphi 0, %s21
      %s25 = sphi 0, %s22
      %s26 = sphi 0, %s23
      %s27 = sphi 0, %s24
      %s28 = sphi 0, %s25
      %s29 = sphi 0, %s26
      %s51 = sphi 0, %s53
      %s54 = sphi 0, %s51
      %s55 = sphi 0, %s54
      %s71 = sphi 0, %s55
      %s85 = sphi 0, %s87
      %s88 = sphi 0, %s85
      %s89 = sphi 0, %s88
      %s105 = sphi 0, %s89
      %s113 = sphi 0, %s115
      %s116 = sphi 0, %s113
      %s117 = sphi 0, %s116
      %s133 = sphi 0, %s117
    $region4: #{tpu_custom_call.1} parent=1 // loop_header_branch
      %17 = sbr.rel (%p15) target = $region8
    $region5: #{tpu_custom_call.1} parent=1 // loop_body
      %s19 = ssub.s32 %s14, 1
      %s20 = ssub.s32 %s14, 2
      %s30 = sadd.s32 1, %s23
      %p31 = scmp.ge.s32.totalorder %s30, 1
      %s32 = scalar_select %p31, 0, %s30
      %s33 = sadd.s32 1, %s22
      %s34 = scalar_select %p31, %s33, %s22
      %p35 = scmp.ge.s32.totalorder %s34, 1
      %s36 = scalar_select %p35, 0, %s34
      %s37 = sadd.s32 1, %s21
      %s38 = scalar_select %p35, %s37, %s21
      %p39 = scmp.ge.s32.totalorder %s38, 2
      %s40 = scalar_select %p39, 0, %s38
      %s41 = sadd.s32 %s22, %s23
      %p42 = scmp.lt.s32.totalorder %s41, 0
      %s43 = scalar_select %p42, %s41, 0
      %s44 = sadd.s32 %s36, %s32
      %p45 = scmp.lt.s32.totalorder %s44, 0
      %s46 = scalar_select %p45, %s44, 0
      %s47 = ssub.s32 %s21, %s40
      %s48 = ssub.s32 %s43, %s46
      %s49 = sor.u32 %s47, %s48
      %p50 = scmp.eq.s32.totalorder %s49, 0
      %s52 = sadd.s32 %s51, 1
      %s53 = scalar_select %p50, %s51, %s52
      %p56 = pneg %p50
      %p57 = scmp.eq.s32.totalorder %s14, 1
      %p58 = por %p56, %p57
      %p59 = scmp.ne.s32.totalorder %s51, %s54
      %p60 = scmp.eq.s32.totalorder %s14, 0
      %p61 = por %p59, %p60
      %p62 = scmp.ne.s32.totalorder %s51, %s54
      %p63 = scmp.eq.s32.totalorder %s19, 1
      %p64 = por %p62, %p63
      %p65 = scmp.ne.s32.totalorder %s54, %s55
      %p66 = scmp.eq.s32.totalorder %s19, 0
      %p67 = por %p65, %p66
      %p68 = scmp.ne.s32.totalorder %s54, %s55
      %p69 = scmp.eq.s32.totalorder %s20, 1
      %p70 = por %p68, %p69
      %p72 = scmp.ne.s32.totalorder %s55, %s71
      %p73 = scmp.eq.s32.totalorder %s20, 0
      %p74 = por %p72, %p73
      %s75 = sadd.s32 %s22, %s23
      %p76 = scmp.lt.s32.totalorder %s75, 0
      %s77 = scalar_select %p76, %s75, 0
      %s78 = sadd.s32 %s36, %s32
      %p79 = scmp.lt.s32.totalorder %s78, 0
      %s80 = scalar_select %p79, %s78, 0
      %s81 = ssub.s32 %s21, %s40
      %s82 = ssub.s32 %s77, %s80
      %s83 = sor.u32 %s81, %s82
      %p84 = scmp.eq.s32.totalorder %s83, 0
      %s86 = sadd.s32 %s85, 1
      %s87 = scalar_select %p84, %s85, %s86
      %p90 = pneg %p84
      %p91 = scmp.eq.s32.totalorder %s14, 1
      %p92 = por %p90, %p91
      %p93 = scmp.ne.s32.totalorder %s85, %s88
      %p94 = scmp.eq.s32.totalorder %s14, 0
      %p95 = por %p93, %p94
      %p96 = scmp.ne.s32.totalorder %s85, %s88
      %p97 = scmp.eq.s32.totalorder %s19, 1
      %p98 = por %p96, %p97
      %p99 = scmp.ne.s32.totalorder %s88, %s89
      %p100 = scmp.eq.s32.totalorder %s19, 0
      %p101 = por %p99, %p100
      %p102 = scmp.ne.s32.totalorder %s88, %s89
      %p103 = scmp.eq.s32.totalorder %s20, 1
      %p104 = por %p102, %p103
      %p106 = scmp.ne.s32.totalorder %s89, %s105
      %p107 = scmp.eq.s32.totalorder %s20, 0
      %p108 = por %p106, %p107
      %s109 = sadd.s32 %s21, %s22
      %s110 = sadd.s32 %s40, %s36
      %s111 = ssub.s32 %s109, %s110
      %p112 = scmp.eq.s32.totalorder %s111, 0
      %s114 = sadd.s32 %s113, 1
      %s115 = scalar_select %p112, %s113, %s114
      %p118 = pneg %p112
      %p119 = scmp.eq.s32.totalorder %s14, 1
      %p120 = por %p118, %p119
      %p121 = scmp.ne.s32.totalorder %s113, %s116
      %p122 = scmp.eq.s32.totalorder %s14, 0
      %p123 = por %p121, %p122
      %p124 = scmp.ne.s32.totalorder %s113, %s116
      %p125 = scmp.eq.s32.totalorder %s19, 1
      %p126 = por %p124, %p125
      %p127 = scmp.ne.s32.totalorder %s116, %s117
      %p128 = scmp.eq.s32.totalorder %s19, 0
      %p129 = por %p127, %p128
      %p130 = scmp.ne.s32.totalorder %s116, %s117
      %p131 = scmp.eq.s32.totalorder %s20, 1
      %p132 = por %p130, %p131
      %p134 = scmp.ne.s32.totalorder %s117, %s133
      %p135 = scmp.eq.s32.totalorder %s20, 0
      %p136 = por %p134, %p135
      %p137 = scmp.le.s32.totalorder 1, %s14
      %p138 = scmp.lt.s32.totalorder %s14, 3
      %p139 = pnand %p137, %p138
      %p140 = pneg %p139
      // Predicated region
      $region9: #{tpu_custom_call.1} parent=5 // pred_check
        _
      $region10: #{tpu_custom_call.1} parent=5 // pred_check_branch
        %142 = sbr.rel (%p139) target = $region12
      $region11: #{tpu_custom_call.1} parent=5 // pred_region
        %s143 = ssub.s32 %s14, 1
      $region12: #{tpu_custom_call.1} parent=5 // pred_fallthru
        _
      %p144 = scmp.lt.s32.totalorder %s14, 2
      // Predicated region
      $region13: #{tpu_custom_call.1} parent=5 // pred_check
        %p145 = pneg %p144
      $region14: #{tpu_custom_call.1} parent=5 // pred_check_branch
        %147 = sbr.rel (%p145) target = $region16
      $region15: #{tpu_custom_call.1} parent=5 // pred_region
        // Predicated region
        $region17: #{tpu_custom_call.1} parent=15 // pred_check
          %p148 = pneg %p61
        $region18: #{tpu_custom_call.1} parent=15 // pred_check_branch
          %150 = sbr.rel (%p148) target = $region20
        $region19: #{tpu_custom_call.1} parent=15 // pred_region
          %s151 = sand.u32 %s51, 1
          %s152 = scalar_lea.sflag [#allocation3], %s151
          %s153 = sand.u32 %s51, 1
          %s154 = smul.addr %s153, 8
          %s155 = scalar_lea.vmem [#allocation2], %s154
          %s156 = sadd.s32 %s22, %s23
          %p157 = scmp.lt.s32.totalorder %s156, 0
          %s158 = scalar_select %p157, %s156, 0
          %s159 = smul.u32 2, %s158
          %161 = vsyncadd %s152, 0
          %s162 = smul.addr %s21, 2
          %s163 = sadd.s32 %s159, %s162
          %s164 = smul.addr %s163, 4
          %s165 = scalar_lea.hbm %s0, %s164
          %s167 = sshll.u32 %s165, 4
          %s168 = int_to_ptr.hbm [resolvable:$true] %s167
          %s169 = sshll.u32 %s155, 4
          %s170 = int_to_ptr.vmem [resolvable:$true] %s169
          %172 = dma.hbm_to_vmem [thread:$0]  %s168, 128, %s170, %s152
        $region20: #{tpu_custom_call.1} parent=15 // pred_fallthru
          _
        // Predicated region
        $region21: #{tpu_custom_call.1} parent=15 // pred_check
          %p173 = pneg %p95
        $region22: #{tpu_custom_call.1} parent=15 // pred_check_branch
          %175 = sbr.rel (%p173) target = $region24
        $region23: #{tpu_custom_call.1} parent=15 // pred_region
          %s176 = sadd.s32 %s22, %s23
          %p177 = scmp.lt.s32.totalorder %s176, 0
          %s178 = scalar_select %p177, %s176, 0
          %s179 = smul.u32 2, %s178
          %p180 = scmp.lt.s32.totalorder %s21, 1
          %s181 = scalar_select %p180, %s21, 1
          %p182 = scmp.lt.s32.totalorder %s179, 1
          %s183 = scalar_select %p182, %s179, 1
          %s184 = smul.addr %s181, 2
          %s185 = sadd.s32 %s183, %s184
          %s186 = scalar_lea.vmem %s1, %s185
          %s187 = sadd.s32 %s22, %s23
          %p188 = scmp.lt.s32.totalorder %s187, 0
          %s189 = scalar_select %p188, %s187, 0
          %s190 = smul.u32 2, %s189
        $region24: #{tpu_custom_call.1} parent=15 // pred_fallthru
          _
      $region16: #{tpu_custom_call.1} parent=5 // pred_fallthru
        _
      %p191 = scmp.le.s32.totalorder 1, %s14
      %p192 = scmp.lt.s32.totalorder %s14, 3
      %p193 = pnand %p191, %p192
      %p194 = pneg %p193
      // Predicated region
      $region25: #{tpu_custom_call.1} parent=5 // pred_check
        _
      $region26: #{tpu_custom_call.1} parent=5 // pred_check_branch
        %196 = sbr.rel (%p193) target = $region28
      $region27: #{tpu_custom_call.1} parent=5 // pred_region
        %s197 = ssub.s32 %s14, 1
        %s198 = sand.u32 %s54, 1
        %s199 = scalar_lea.sflag [#allocation3], %s198
        %s200 = sand.u32 %s54, 1
        %s201 = smul.addr %s200, 8
        %s202 = scalar_lea.vmem [#allocation2], %s201
        // Predicated region
        $region29: #{tpu_custom_call.1} parent=27 // pred_check
          %p203 = pneg %p67
        $region30: #{tpu_custom_call.1} parent=27 // pred_check_branch
          %205 = sbr.rel (%p203) target = $region32
        $region31: #{tpu_custom_call.1} parent=27 // pred_region
          %207 = dma.done %s199, 128
        $region32: #{tpu_custom_call.1} parent=27 // pred_fallthru
          _
        %s208 = sand.u32 %s54, 1
        %s209 = scalar_lea.sflag [#allocation3], %s208
        %s210 = sand.u32 %s54, 1
        %s211 = smul.addr %s210, 8
        %s212 = scalar_lea.vmem [#allocation2], %s211
        %p213 = pneg %p67
        %p214 = pneg %p64
        %s215 = sadd.s32 %s25, %s26
        %p216 = scmp.lt.s32.totalorder %s215, 0
        %s217 = scalar_select %p216, %s215, 0
        %s218 = smul.u32 2, %s217
        %p219 = scmp.lt.s32.totalorder %s24, 1
        %s220 = scalar_select %p219, %s24, 1
        %p221 = scmp.lt.s32.totalorder %s218, 1
        %s222 = scalar_select %p221, %s218, 1
        %s223 = smul.addr %s220, 2
        %s224 = sadd.s32 %s222, %s223
        %s225 = scalar_lea.vmem %s1, %s224
        %p226 = pneg %p101
        %p227 = pneg %p98
        %p228 = pneg %p129
        %p229 = pneg %p126
        %s230 = sand.u32 %s116, 1
        %s231 = scalar_lea.sflag [#allocation4], %s230
        %s232 = sand.u32 %s116, 1
        %s233 = smul.addr %s232, 2
        %s234 = scalar_lea.vmem [#allocation5], %s233
        %s235 = sadd.s32 %s25, %s26
        %p236 = scmp.lt.s32.totalorder %s235, 0
        %s237 = scalar_select %p236, %s235, 0
        %s238 = smul.u32 2, %s237
        %s239 = sadd.s32 %s25, %s26
        %p240 = scmp.lt.s32.totalorder %s239, 0
        %s241 = scalar_select %p240, %s239, 0
        %s242 = smul.u32 2, %s241
        %p243 = scmp.lt.s32.totalorder %s24, 1
        %s244 = scalar_select %p243, %s24, 1
        %p245 = scmp.lt.s32.totalorder %s242, 1
        %s246 = scalar_select %p245, %s242, 1
        %s247 = smul.addr %s244, 2
        %s248 = sadd.s32 %s246, %s247
        %s249 = scalar_lea.vmem %s1, %s248
        %s250 = sadd.s32 %s25, %s26
        %p251 = scmp.lt.s32.totalorder %s250, 0
        %s252 = scalar_select %p251, %s250, 0
        %s253 = smul.u32 2, %s252
        %s254 = sadd.s32 %s24, %s25
        %p255 = scmp.eq.s32.totalorder %s26, 0
        // Predicated region
        $region33: #{tpu_custom_call.1} parent=27 // pred_check
          %p256 = pneg %p255
        $region34: #{tpu_custom_call.1} parent=27 // pred_check_branch
          %258 = sbr.rel (%p256) target = $region36
        $region35: #{tpu_custom_call.1} parent=27 // pred_region
          %v259 = vlaneseq
          %vm260 = vcmp.ge.s32.totalorder %v259, 0
          %vm261 = vcmp.lt.s32.totalorder %v259, 256
          %vm262 = vmand %vm260, %vm261
          %263 = vst.msk [vmem:[%s234] sm:$0x3] %vm262, 0.0
        $region36: #{tpu_custom_call.1} parent=27 // pred_fallthru
          _
        %v264 = vld [vmem:[%s202] sm:$0xff]
        %v265 = vld [vmem:[%s249] sm:$0x3]
        %v266 = vunpack.c.l.b16 %v265
        %268 = vst [vmem:[#allocation1] ss:$2 sm:$0xff] %v264
        %v269 = vld.sshfl [vmem:[#allocation1] sm:$0xff pattern:$0x75316420]
        %v270 = vld.sshfl [vmem:[#allocation1 + $0x8] sm:$0xff pattern:$0x75316420]
        %vm273 = vcmask 1043456
        %v274 = vsel %vm273, %v269, -inf
        %v275 = vrot.slane %v274, 4
        %v276 = vmax.f32 %v274, %v275
        %v277 = vrot.slane %v276, 2
        %v278 = vmax.f32 %v276, %v277
        %v279 = vrot.slane %v278, 1
        %v280 = vmax.f32 %v278, %v279
        %v281 = vsel %vm273, %v270, -inf
        %v282 = vrot.slane %v281, 4
        %v283 = vmax.f32 %v281, %v282
        %v284 = vrot.slane %v283, 2
        %v285 = vmax.f32 %v283, %v284
        %v286 = vrot.slane %v285, 1
        %v287 = vmax.f32 %v285, %v286
        %v290 = vrot.slane %v287, 4
        %v291 = vsel %vm273, %v280, %v290
        %v293 = vsub.f32 %v264, %v291
        %v294 = vmul.f32 %v293, 1.442695
        %v295 = vpow.pop %v294
        %297 = vst [vmem:[#allocation1] ss:$2 sm:$0xff] %v295
        %v298 = vld.sshfl [vmem:[#allocation1] sm:$0xff pattern:$0x75316420]
        %v299 = vld.sshfl [vmem:[#allocation1 + $0x8] sm:$0xff pattern:$0x75316420]
        %v302 = vsel %vm273, %v298, 0.0
        %v303 = vrot.slane %v302, 4
        %v304 = vadd.f32 %v302, %v303
        %v305 = vrot.slane %v304, 2
        %v306 = vadd.f32 %v304, %v305
        %v307 = vrot.slane %v306, 1
        %v308 = vadd.f32 %v306, %v307
        %v309 = vsel %vm273, %v299, 0.0
        %v310 = vrot.slane %v309, 4
        %v311 = vadd.f32 %v309, %v310
        %v312 = vrot.slane %v311, 2
        %v313 = vadd.f32 %v311, %v312
        %v314 = vrot.slane %v313, 1
        %v315 = vadd.f32 %v313, %v314
        %v316 = vlog2.pop %v308
        %v317 = vmul.f32 %v316, 0.6931472
        %v318 = vlog2.pop %v315
        %v319 = vmul.f32 %v318, 0.6931472
        %v320 = vadd.f32 %v280, %v317
        %v321 = vadd.f32 %v287, %v319
        %v322 = vlaneseq
        %v323 = vshrl.u32 %v322, 7
        %v324 = vperm.slane %v266, 0
        %v325 = vperm.slane %v266, 2
        %v326 = vperm.slane %v324, 0
        %v327 = vperm.slane %v325, 0
        %vm328 = vcmp.eq.s32.totalorder %v323, %v326
        %vm329 = vcmp.eq.s32.totalorder %v323, %v327
        %330 = vst [vmem:[#allocation1] ss:$2 sm:$0xff] %v264
        %v331 = vld.sshfl [vmem:[#allocation1] sm:$0xff pattern:$0x75316420]
        %v332 = vld.sshfl [vmem:[#allocation1 + $0x8] sm:$0xff pattern:$0x75316420]
        %v335 = vsel %vm328, %v331, 0.0
        %v336 = vsel %vm329, %v332, 0.0
        %v337 = vsel %vm273, %v335, 0.0
        %v338 = vrot.slane %v337, 4
        %v339 = vadd.f32 %v337, %v338
        %v340 = vrot.slane %v339, 2
        %v341 = vadd.f32 %v339, %v340
        %v342 = vrot.slane %v341, 1
        %v343 = vadd.f32 %v341, %v342
        %v344 = vsel %vm273, %v336, 0.0
        %v345 = vrot.slane %v344, 4
        %v346 = vadd.f32 %v344, %v345
        %v347 = vrot.slane %v346, 2
        %v348 = vadd.f32 %v346, %v347
        %v349 = vrot.slane %v348, 1
        %v350 = vadd.f32 %v348, %v349
        %vm351 = vcmp.ne.s32.totalorder %v266, 255
        %v352 = vsub.f32 %v320, %v343
        %v353 = vsub.f32 %v321, %v350
        %v356 = vrot.slane %v353, 6
        %vm357 = vcmask 1041408
        %v358 = vsel %vm357, %v352, %v356
        %v360 = vsel %vm351, %v358, 0.0
        %v361 = vld [vmem:[%s234] sm:$0x3]
        %v363 = vrot.slane %v360, 1
        %v364 = vrot.slane %v360, 2
        %v365 = vrot.slane %v360, 3
        %vm366 = vcmask 1040384
        %v367 = vsel %vm366, %v360, %v363
        %vm368 = vcmask 1042434
        %v369 = vsel %vm368, %v364, %v365
        %v370 = vsel %vm357, %v367, %v369
        %v372 = vadd.f32 %v361, %v370
        %v373 = vlaneseq
        %vm374 = vcmp.ge.s32.totalorder %v373, 0
        %vm375 = vcmp.lt.s32.totalorder %v373, 256
        %vm376 = vmand %vm374, %vm375
        %377 = vst.msk [vmem:[%s234] sm:$0x3] %vm376, %v372
        %s378 = sand.u32 %s116, 1
        %s379 = scalar_lea.sflag [#allocation4], %s378
        %s380 = sand.u32 %s116, 1
        %s381 = smul.addr %s380, 2
        %s382 = scalar_lea.vmem [#allocation5], %s381
        // Predicated region
        $region37: #{tpu_custom_call.1} parent=27 // pred_check
          %p383 = pneg %p126
        $region38: #{tpu_custom_call.1} parent=27 // pred_check_branch
          %385 = sbr.rel (%p383) target = $region40
        $region39: #{tpu_custom_call.1} parent=27 // pred_region
          %s386 = sadd.s32 %s24, %s25
          %388 = vsyncadd %s379, 0
          %s389 = smul.addr %s386, 2
          %s390 = scalar_lea.hbm %s2, %s389
          %s392 = sshll.u32 %s382, 4
          %s393 = int_to_ptr.vmem [resolvable:$true] %s392
          %s394 = sshll.u32 %s390, 4
          %s395 = int_to_ptr.hbm [resolvable:$true] %s394
          %397 = dma.vmem_to_hbm [thread:$0]  %s393, 32, %s395, %s379
        $region40: #{tpu_custom_call.1} parent=27 // pred_fallthru
          _
      $region28: #{tpu_custom_call.1} parent=5 // pred_fallthru
        _
      %p398 = scmp.le.s32.totalorder 2, %s14
      // Predicated region
      $region41: #{tpu_custom_call.1} parent=5 // pred_check
        %p399 = pneg %p398
      $region42: #{tpu_custom_call.1} parent=5 // pred_check_branch
        %401 = sbr.rel (%p399) target = $region44
      $region43: #{tpu_custom_call.1} parent=5 // pred_region
        %s402 = ssub.s32 %s14, 2
        // Predicated region
        $region45: #{tpu_custom_call.1} parent=43 // pred_check
          %p403 = pneg %p132
        $region46: #{tpu_custom_call.1} parent=43 // pred_check_branch
          %405 = sbr.rel (%p403) target = $region48
        $region47: #{tpu_custom_call.1} parent=43 // pred_region
          %s406 = sand.u32 %s117, 1
          %s407 = scalar_lea.sflag [#allocation4], %s406
          %s408 = sand.u32 %s117, 1
          %s409 = smul.addr %s408, 2
          %s410 = scalar_lea.vmem [#allocation5], %s409
          %412 = dma.done %s407, 32
        $region48: #{tpu_custom_call.1} parent=43 // pred_fallthru
          _
      $region44: #{tpu_custom_call.1} parent=5 // pred_fallthru
        _
    $region6: #{tpu_custom_call.1} parent=1 // loop_footer
      %s18 = sadd.s32 1, %s14
    $region7: #{tpu_custom_call.1} parent=1 // loop_footer_branch
      %13 = sbr.rel target = $region3
    $region8: #{tpu_custom_call.1} parent=1 // loop_exit
      _
    %413 = vsyncpa [#allocation3], 1
    %s414 = scalar_lea.sflag [#allocation3], 1
    %415 = vsyncpa %s414, 1
    %416 = vsyncpa [#allocation4], 1
    %s417 = scalar_lea.sflag [#allocation4], 1
    %418 = vsyncpa %s417, 1

</llo_original>
